<compile_context>
chip_gen: v5e
topology: v5e:2x2
jax: 0.10.0
libtpu: 0.0.40
codegen_flags: <defaults>
</compile_context>

<pallas_src>
import functools

import jax
import jax.numpy as jnp
from jax.experimental import pallas as pl
from jax.experimental.pallas import tpu as pltpu

_DIMS_TAIL = (32, 64, 32, 16, 8, 1)  # hidden1..output fan-outs fixed by the module


def init_params(key, in_dim):
    """nn.Linear-style init (U(+-1/sqrt(fan_in))). Weights stored as [in, out]."""
    dims = (in_dim,) + _DIMS_TAIL
    params = []
    for i in range(len(dims) - 1):
        fan_in, fan_out = dims[i], dims[i + 1]
        key, kw, kb = jax.random.split(key, 3)
        bound = 1.0 / float(fan_in) ** 0.5
        w = jax.random.uniform(kw, (fan_in, fan_out), jnp.float32, -bound, bound)
        b = jax.random.uniform(kb, (fan_out,), jnp.float32, -bound, bound)
        params.append((w, b))
    return params, dims


def fold_params(params, dims):
    """Fold the activation-free Linear chain into one affine map (host-side, once).

    With no nonlinearity between layers:
        (((x@W1+b1)@W2+b2)...)@W6+b6  ==  x @ W_eff + b_eff
    where W_eff = W1@W2@...@W6 is [in_dim, 1] and b_eff is a scalar.
    """
    assert len(params) == len(dims) - 1, "params/dims mismatch"
    for (w, b), fan_in, fan_out in zip(params, dims[:-1], dims[1:]):
        assert w.shape == (fan_in, fan_out), (w.shape, fan_in, fan_out)
        assert b.reshape(-1).shape == (fan_out,), (b.shape, fan_out)

    w_eff = params[0][0].astype(jnp.float32)                 # [in_dim, 32]
    b_eff = params[0][1].reshape(1, -1).astype(jnp.float32)  # [1, 32]
    for (w, b) in params[1:]:
        w = w.astype(jnp.float32)
        b = b.reshape(1, -1).astype(jnp.float32)
        w_eff = w_eff @ w
        b_eff = b_eff @ w + b
    # w_eff: [in_dim, 1], b_eff: [1, 1]
    return w_eff, b_eff.reshape(1, 1)


def _folded_net_kernel(x_ref, w_ref, b_ref, o_ref):
    """sigmoid(x @ W_eff + b_eff) in one dot + one EUP transcendental.

    x_ref: [B, in_dim] f32 VMEM
    w_ref: [in_dim, 1] f32 VMEM   (folded weight column)
    b_ref: [1, 1]      f32 SMEM   (folded bias scalar)
    o_ref: [B, 1]      f32 VMEM
    """
    z = jnp.dot(x_ref[...], w_ref[...], preferred_element_type=jnp.float32)
    z = z + b_ref[0, 0]
    # Numerically stable sigmoid via a single tanh (EUP slot), no divide.
    o_ref[...] = 0.5 * jnp.tanh(0.5 * z) + 0.5


@jax.jit
def _net_forward_impl(x, w_eff, b_eff):
    if x.dtype != jnp.float32:   # torch's x.to(float32); no-op / no HLO if already f32
        x = x.astype(jnp.float32)
    B, in_dim = x.shape
    out = pl.pallas_call(
        _folded_net_kernel,
        out_shape=jax.ShapeDtypeStruct((B, 1), jnp.float32),
        # Everything is tiny: full-array blocks, single invocation, no grid.
        in_specs=[
            pl.BlockSpec(memory_space=pltpu.VMEM),   # x      [B, in_dim]
            pl.BlockSpec(memory_space=pltpu.VMEM),   # W_eff  [in_dim, 1]
            pl.BlockSpec(memory_space=pltpu.SMEM),   # b_eff  [1, 1] scalar
        ],
        out_specs=pl.BlockSpec(memory_space=pltpu.VMEM),
        cost_estimate=pl.CostEstimate(
            flops=2 * B * in_dim + 3 * B,
            transcendentals=B,
            bytes_accessed=4 * (B * in_dim + in_dim + 1 + B),
        ),
    )(x, w_eff, b_eff)
    return out.reshape(-1)   # (B,1) -> (B,), metadata-only; matches torch view(-1)


def net_forward(x, w_eff, b_eff):
    """Pallas-backed forward pass of Net. Returns a flat vector of shape [B]."""
    return _net_forward_impl(x, w_eff, b_eff)


def reference_forward(x, params):
    """Pure-JAX reference: the literal 6-layer chain from the PyTorch module."""
    h = x.astype(jnp.float32)
    for (w, b) in params:
        h = h @ w + b.reshape(1, -1)
    return jax.nn.sigmoid(h).reshape(-1)


if __name__ == "__main__":
    key = jax.random.PRNGKey(0)
    k_x, k_p = jax.random.split(key)

    B, in_dim = 8, 16
    x = jax.random.normal(k_x, (B, in_dim), jnp.float32)
    params, dims = init_params(k_p, in_dim)
    w_eff, b_eff = fold_params(params, dims)

    y = net_forward(x, w_eff, b_eff)
    y = jax.block_until_ready(y)

    y_ref = reference_forward(x, params)
    assert y.shape == (B,), y.shape
    assert jnp.allclose(y, y_ref, atol=1e-5, rtol=1e-5), (y, y_ref)

    print("KERNEL_OK")
</pallas_src>

<mosaic_0001>
module attributes {stable_mosaic.version = 11 : i64} {
  func.func @_folded_net_kernel(%arg0: memref<8x16xf32, #tpu.memory_space<vmem>>, %arg1: memref<16x1xf32, #tpu.memory_space<vmem>>, %arg2: memref<1x1xf32, #tpu.memory_space<smem>>, %arg3: memref<8x1xf32, #tpu.memory_space<vmem>>) attributes {dimension_semantics = [], scalar_prefetch = 0 : i64, scratch_operands = 0 : i64, tpu.core_type = #tpu.core_type<tc>} {
    %c0 = arith.constant 0 : index
    %c0_0 = arith.constant 0 : index
    %0 = vector.load %arg0[%c0, %c0_0] : memref<8x16xf32, #tpu.memory_space<vmem>>, vector<8x16xf32>
    %c0_1 = arith.constant 0 : index
    %c0_2 = arith.constant 0 : index
    %1 = vector.load %arg1[%c0_1, %c0_2] : memref<16x1xf32, #tpu.memory_space<vmem>>, vector<16x1xf32>
    %cst = arith.constant dense<0.000000e+00> : vector<8x1xf32>
    %2 = tpu.matmul %0, %1, %cst {dimension_numbers = #tpu.dot_dimension_numbers<[1], [0], [0], [1], [0, 0, 1, 1], [], []>} : vector<8x16xf32>, vector<16x1xf32>, vector<8x1xf32> -> vector<8x1xf32>
    %c0_3 = arith.constant 0 : index
    %c0_4 = arith.constant 0 : index
    %3 = memref.load %arg2[%c0_3, %c0_4] : memref<1x1xf32, #tpu.memory_space<smem>>
    %4 = vector.broadcast %3 : f32 to vector<8x1xf32>
    %5 = arith.addf %2, %4 : vector<8x1xf32>
    %cst_5 = arith.constant 5.000000e-01 : f32
    %6 = vector.broadcast %cst_5 : f32 to vector<8x1xf32>
    %7 = arith.mulf %6, %5 : vector<8x1xf32>
    %8 = math.tanh %7 : vector<8x1xf32>
    %cst_6 = arith.constant 5.000000e-01 : f32
    %9 = vector.broadcast %cst_6 : f32 to vector<8x1xf32>
    %10 = arith.mulf %9, %8 : vector<8x1xf32>
    %cst_7 = arith.constant 5.000000e-01 : f32
    %11 = vector.broadcast %cst_7 : f32 to vector<8x1xf32>
    %12 = arith.addf %10, %11 : vector<8x1xf32>
    %c0_8 = arith.constant 0 : index
    %c0_9 = arith.constant 0 : index
    %13 = vector.load %arg3[%c0_8, %c0_9] : memref<8x1xf32, #tpu.memory_space<vmem>>, vector<8x1xf32>
    tpu.vector_store %arg3[%c0_8, %c0_9], %12 {strides = array<i32>} : memref<8x1xf32, #tpu.memory_space<vmem>>, vector<8x1xf32>,
    return
  }
}

</mosaic_0001>

<llo_original>
// kernel: _net_forward_impl.1
$region0: #{_net_forward_impl.1}
  #allocation0 [shape = 'u32[]', space=smem, size = 0x4, offset = 0x4, fixed_abs, tag = 'smem constant byte address 0x4 - core index']
  #allocation1 [shape = 'u32[72,128]{1,0:T(1,128)}', space=vmem, size = 0x9000, scoped, tag = 'internal scratch']
  #allocation2 [shape = 'f32[1,1]{1,0:T(1,128)S(6)}', space=smem, size = 0x200, scoped, tag = 'scoped memory for _net_forward_impl.1']
  %s0 = inlined_call_operand.vmem [shape: f32[8,16], index: 0, kind: input, shape index: {}]
  %s1 = inlined_call_operand.vmem [shape: f32[16,1], index: 1, kind: input, shape index: {}]
  %s2 = inlined_call_operand.<no memory space> [shape: f32[1,1], index: 2, kind: input, shape index: {}]
  %s3 = inlined_call_operand.vmem [shape: f32[8,1], index: 3, kind: output, shape index: {}]
  %s4 = sld [smem:[#allocation0]]
  $region22: #{_net_forward_impl.1} parent=0
    _
  %s6 = ssub.s32 1, %s4
  %s7 = scalar_select 0, %s6, %s4
  %8 = sst [smem:[#allocation2]] %s2
  // Predicated region
  $region2: #{_net_forward_impl.1} parent=0 // pred_check
    _
  $region3: #{_net_forward_impl.1} parent=0 // pred_check_branch
    %10 = sbr.rel (0) target = $region5
  $region4: #{_net_forward_impl.1} parent=0 // pred_region
    _
  $region5: #{_net_forward_impl.1} parent=0 // pred_fallthru
    _
  // Predicated region
  $region6: #{_net_forward_impl.1} parent=0 // pred_check
    _
  $region7: #{_net_forward_impl.1} parent=0 // pred_check_branch
    %12 = sbr.rel (0) target = $region9
  $region8: #{_net_forward_impl.1} parent=0 // pred_region
    _
  $region9: #{_net_forward_impl.1} parent=0 // pred_fallthru
    _
  // Predicated region
  $region10: #{_net_forward_impl.1} parent=0 // pred_check
    _
  $region11: #{_net_forward_impl.1} parent=0 // pred_check_branch
    %14 = sbr.rel (0) target = $region13
  $region12: #{_net_forward_impl.1} parent=0 // pred_region
    _
  $region13: #{_net_forward_impl.1} parent=0 // pred_fallthru
    _
  %v15 = vld [vmem:[%s0] sm:$0xff]
  %v16 = vld [vmem:[%s1] sm:$0xff]
  %v17 = vld [vmem:[%s1 + $0x8] sm:$0xff]
  %s18 = sld [smem:[#allocation2]]
  %v19 = vstv %s18
  %vm20 = vcmask 130048
  %v22 = vsel %vm20, %v15, 0
  %24 = vmatpush.msra.mxu0 0.0
  %25 = vmatpush.msra.mxu0 0.0
  %26 = vmatpush.msra.mxu0 0.0
  %27 = vmatpush.msra.mxu0 0.0
  %28 = vmatpush.msra.mxu0 0.0
  %29 = vmatpush.msra.mxu0 0.0
  %30 = vmatpush.msra.mxu0 0.0
  %31 = vmatpush.msra.mxu0 0.0
  %32 = vmatpush.msra.mxu0 0.0
  %33 = vmatpush.msra.mxu0 0.0
  %34 = vmatpush.msra.mxu0 0.0
  %35 = vmatpush.msra.mxu0 0.0
  %36 = vmatpush.msra.mxu0 0.0
  %37 = vmatpush.msra.mxu0 0.0
  %38 = vmatpush.msra.mxu0 %v17
  %39 = vmatpush.msra.mxu0 %v16
  %40 = vmatmul.f32.gmra.mxu0 %v22
  %v41 = vpop.f32.mrf.mxu0
  %v42 = vadd.f32 %v19, %v41
  %43 = vdwg.mxu0
  %v44 = vmul.f32 %v42, 0.5
  %v45 = vtanh.pop %v44
  %v46 = vmul.f32 %v45, 0.5
  %v47 = vadd.f32 %v46, 0.5
  %vm48 = vcmask 7168
  %49 = vst.msk [vmem:[%s3] sm:$0xff] %vm48, %v47
  // Predicated region
  $region14: #{_net_forward_impl.1} parent=0 // pred_check
    _
  $region15: #{_net_forward_impl.1} parent=0 // pred_check_branch
    %51 = sbr.rel (0) target = $region17
  $region16: #{_net_forward_impl.1} parent=0 // pred_region
    _
  $region17: #{_net_forward_impl.1} parent=0 // pred_fallthru
    _
  // Predicated region
  $region18: #{_net_forward_impl.1} parent=0 // pred_check
    _
  $region19: #{_net_forward_impl.1} parent=0 // pred_check_branch
    %53 = sbr.rel (0) target = $region21
  $region20: #{_net_forward_impl.1} parent=0 // pred_region
    _
  $region21: #{_net_forward_impl.1} parent=0 // pred_fallthru
    _

</llo_original>
